<compile_context>
chip_gen: v5e
topology: v5e:2x2
jax: 0.10.0
libtpu: 0.0.40
codegen_flags: <defaults>
</compile_context>

<pallas_src>
import functools

import jax
import jax.numpy as jnp
import numpy as np
from jax import lax
from jax.experimental import pallas as pl
from jax.experimental.pallas import tpu as pltpu


def _mha_kernel(seq_ref,   # SMEM (B,)  int32  valid sequence lengths (scalar prefetch)
                q_ref,     # VMEM (H, T, hs) f32  head-major query   (batch squeezed)
                k_ref,     # VMEM (H, T, hs) f32  head-major key
                v_ref,     # VMEM (H, T, hs) f32  head-major value
                wpT_ref,   # VMEM (H*hs, E) f32   pre-transposed output projection
                bp_ref,    # VMEM (1, E) f32      output projection bias
                o_ref,     # VMEM (T, E)          rows b*T:(b+1)*T of the (B*T, E) output
                *, T, H, hs):
    b = pl.program_id(0)
    scale = 1.0 / (hs ** 0.5)

    # Padding mask for this batch element: rows >= seq_len are padding.
    row_ids = lax.broadcasted_iota(jnp.int32, (T, 1), 0)       # (T, 1)
    pad = row_ids >= seq_ref[b]                                 # (T, 1) bool

    # Zero-mask q and k (NOT v), exactly as in the PyTorch module.
    q = jnp.where(pad, 0.0, q_ref[...])                        # (H, T, hs)
    k = jnp.where(pad, 0.0, k_ref[...])                        # (H, T, hs)
    v = v_ref[...]                                              # (H, T, hs)

    # Head-batched QK^T: one batched dot_general instead of H separate MXU pushes.
    s = lax.dot_general(q, k, (((2,), (2,)), ((0,), (0,))),
                        preferred_element_type=jnp.float32) * scale       # (H, T, T)

    # f32 softmax over keys.  Zero-masking keeps exp(0)=1 in every row's
    # denominator, so denom >= 1 and the NaN guard of the PyTorch code is
    # unreachable.  Exact divide preserves the 1e-5 tolerance.
    m = jnp.max(s, axis=-1, keepdims=True)
    e = jnp.exp(s - m)
    denom = jnp.sum(e, axis=-1, keepdims=True)
    p = e / denom                                                          # (H, T, T)

    # Head-batched P @ V.
    o_heads = lax.dot_general(p, v, (((2,), (1,)), ((0,), (0,))),
                              preferred_element_type=jnp.float32)          # (H, T, hs)

    # Concatenate heads along lanes, then ONE output-projection matmul with
    # contraction depth K = H*hs, bias added once in the epilogue.
    cat = jnp.concatenate([o_heads[h] for h in range(H)], axis=-1)         # (T, H*hs)
    y = jnp.dot(cat, wpT_ref[...],
                preferred_element_type=jnp.float32) + bp_ref[...]          # (T, E)

    # Single lane-dense store of the whole (T, E) slab.
    o_ref[...] = y.astype(o_ref.dtype)


def prepare_params(wp, bp):
    """One-time parameter layout prep (do NOT redo per forward call).

    wp: (E, H*hs) nn.Linear weight; bp: (E,) bias.
    Returns wpT (H*hs, E) and bp2 (1, E)."""
    return jnp.asarray(wp).T, jnp.asarray(bp).reshape(1, -1)


@jax.jit
def multihead_forward(x, seq_lengths, wq, wk, wv, wpT, bp2):
    """x: (B, T, E) f32; seq_lengths: (B,) int; wq/wk/wv: (H, hs, E);
    wpT: (H*hs, E) pre-transposed; bp2: (1, E).  Returns (B, T, E)."""
    B, T, E = x.shape
    H, hs, _ = wq.shape

    # Head-major q/k/v projections.  These are plain XLA GEMMs (activation
    # dependent, so per-call), emitted directly in the (B, H, T, hs) layout the
    # kernel wants -- no in-kernel narrow-column slicing or relayouts.
    hi = lax.Precision.HIGHEST
    q = jnp.einsum('bte,hde->bhtd', x, wq, precision=hi)
    k = jnp.einsum('bte,hde->bhtd', x, wk, precision=hi)
    v = jnp.einsum('bte,hde->bhtd', x, wv, precision=hi)

    kernel = functools.partial(_mha_kernel, T=T, H=H, hs=hs)

    out2d = pl.pallas_call(
        kernel,
        out_shape=jax.ShapeDtypeStruct((B * T, E), x.dtype),
        grid_spec=pltpu.PrefetchScalarGridSpec(
            num_scalar_prefetch=1,                 # seq_lengths -> SMEM
            grid=(B,),
            in_specs=[
                pl.BlockSpec((None, H, T, hs), lambda b, seq: (b, 0, 0, 0)),  # q
                pl.BlockSpec((None, H, T, hs), lambda b, seq: (b, 0, 0, 0)),  # k
                pl.BlockSpec((None, H, T, hs), lambda b, seq: (b, 0, 0, 0)),  # v
                pl.BlockSpec((H * hs, E),      lambda b, seq: (0, 0)),        # Wp^T
                pl.BlockSpec((1, E),           lambda b, seq: (0, 0)),        # bias
            ],
            out_specs=pl.BlockSpec((T, E), lambda b, seq: (b, 0)),
        ),
        compiler_params=pltpu.CompilerParams(
            dimension_semantics=("parallel",),     # megacore-shardable on v7x
            vmem_limit_bytes=32 * 1024 * 1024,
        ),
    )(seq_lengths.astype(jnp.int32), q, k, v, wpT, bp2)

    return out2d.reshape(B, T, E)


def multihead_reference(x, seq_lengths, wq, wk, wv, wp, bp):
    """Pure-JAX mirror of the PyTorch MultiHead forward (eval mode)."""
    B, T, E = x.shape
    H, hs, _ = wq.shape
    hi = lax.Precision.HIGHEST
    mask = (jnp.arange(T)[None, :] >= seq_lengths[:, None])[..., None]  # (B, T, 1)
    outs = []
    for h in range(H):
        q = jnp.einsum('bte,de->btd', x, wq[h], precision=hi)
        k = jnp.einsum('bte,de->btd', x, wk[h], precision=hi)
        v = jnp.einsum('bte,de->btd', x, wv[h], precision=hi)
        q = jnp.where(mask, 0.0, q)
        k = jnp.where(mask, 0.0, k)
        s = jnp.einsum('btd,bsd->bts', q, k, precision=hi) / (hs ** 0.5)
        w = jax.nn.softmax(s, axis=-1)
        w = jnp.where(jnp.isnan(w), 0.0, w)
        outs.append(jnp.einsum('bts,bsd->btd', w, v, precision=hi))
    cat = jnp.concatenate(outs, axis=-1)
    return jnp.einsum('btk,ek->bte', cat, wp, precision=hi) + bp


if __name__ == "__main__":
    # Small shapes consistent with the module: embedding_dim=32, num_heads=4,
    # head_size=8, batch=2, seq=8.
    B, T, E = 2, 8, 32
    H, hs = 4, 8

    key = jax.random.PRNGKey(0)
    kx, kq, kk, kv, kp, kb = jax.random.split(key, 6)

    x = jax.random.normal(kx, (B, T, E), dtype=jnp.float32)
    seq_lengths = jnp.array([5, 8], dtype=jnp.int32)

    # nn.Linear weight shapes: (out, in); projection Linear(H*hs -> E).
    wq = 0.1 * jax.random.normal(kq, (H, hs, E), dtype=jnp.float32)
    wk = 0.1 * jax.random.normal(kk, (H, hs, E), dtype=jnp.float32)
    wv = 0.1 * jax.random.normal(kv, (H, hs, E), dtype=jnp.float32)
    wp = 0.1 * jax.random.normal(kp, (E, H * hs), dtype=jnp.float32)
    bp = 0.1 * jax.random.normal(kb, (E,), dtype=jnp.float32)

    # One-time parameter layout prep (kept out of the per-call forward).
    wpT, bp2 = prepare_params(wp, bp)

    out = multihead_forward(x, seq_lengths, wq, wk, wv, wpT, bp2)
    out = jax.block_until_ready(out)

    ref = multihead_reference(x, seq_lengths, wq, wk, wv, wp, bp)
    np.testing.assert_allclose(np.asarray(out), np.asarray(ref),
                               rtol=1e-5, atol=1e-5)
    print("KERNEL_OK")
</pallas_src>

<mosaic_0001>
module attributes {stable_mosaic.version = 11 : i64} {
  func.func @_mha_kernel(%arg0: i32, %arg1: memref<2xi32, #tpu.memory_space<smem>>, %arg2: memref<1x4x8x8xf32, #tpu.memory_space<vmem>>, %arg3: memref<1x4x8x8xf32, #tpu.memory_space<vmem>>, %arg4: memref<1x4x8x8xf32, #tpu.memory_space<vmem>>, %arg5: memref<32x32xf32, #tpu.memory_space<vmem>>, %arg6: memref<1x32xf32, #tpu.memory_space<vmem>>, %arg7: memref<8x32xf32, #tpu.memory_space<vmem>>) attributes {dimension_semantics = [#tpu.dimension_semantics<parallel>], iteration_bounds = array<i64: 2>, scalar_prefetch = 1 : i64, scratch_operands = 0 : i64, tpu.core_type = #tpu.core_type<tc>, window_params = [{transform_indices = @transform_0, window_bounds = array<i64: 1, 4, 8, 8>}, {transform_indices = @transform_1, window_bounds = array<i64: 1, 4, 8, 8>}, {transform_indices = @transform_2, window_bounds = array<i64: 1, 4, 8, 8>}, {pipeline_mode = #tpu.pipeline_mode<synchronous>, transform_indices = @transform_3, window_bounds = array<i64: 32, 32>}, {pipeline_mode = #tpu.pipeline_mode<synchronous>, transform_indices = @transform_4, window_bounds = array<i64: 1, 32>}, {transform_indices = @transform_5, window_bounds = array<i64: 8, 32>}]} {
    %0 = tpu.iota {dimensions = array<i32: 0>} : vector<8x1xi32>
    %1 = arith.index_cast %arg0 : i32 to index
    %2 = memref.load %arg1[%1] : memref<2xi32, #tpu.memory_space<smem>>
    %3 = vector.broadcast %2 : i32 to vector<8x1xi32>
    %4 = arith.cmpi sge, %0, %3 : vector<8x1xi32>
    %c0 = arith.constant 0 : index
    %c0_0 = arith.constant 0 : index
    %c0_1 = arith.constant 0 : index
    %c0_2 = arith.constant 0 : index
    %5 = vector.load %arg2[%c0, %c0_0, %c0_1, %c0_2] : memref<1x4x8x8xf32, #tpu.memory_space<vmem>>, vector<1x4x8x8xf32>
    %6 = vector.shape_cast %5 : vector<1x4x8x8xf32> to vector<4x8x8xf32>
    %cst = arith.constant 0.000000e+00 : f32
    %7 = vector.shape_cast %4 : vector<8x1xi1> to vector<1x8x1xi1>
    %8 = vector.broadcast %7 : vector<1x8x1xi1> to vector<4x8x8xi1>
    %9 = vector.broadcast %cst : f32 to vector<4x8x8xf32>
    %10 = arith.select %8, %9, %6 : vector<4x8x8xi1>, vector<4x8x8xf32>
    %c0_3 = arith.constant 0 : index
    %c0_4 = arith.constant 0 : index
    %c0_5 = arith.constant 0 : index
    %c0_6 = arith.constant 0 : index
    %11 = vector.load %arg3[%c0_3, %c0_4, %c0_5, %c0_6] : memref<1x4x8x8xf32, #tpu.memory_space<vmem>>, vector<1x4x8x8xf32>
    %12 = vector.shape_cast %11 : vector<1x4x8x8xf32> to vector<4x8x8xf32>
    %cst_7 = arith.constant 0.000000e+00 : f32
    %13 = vector.shape_cast %4 : vector<8x1xi1> to vector<1x8x1xi1>
    %14 = vector.broadcast %13 : vector<1x8x1xi1> to vector<4x8x8xi1>
    %15 = vector.broadcast %cst_7 : f32 to vector<4x8x8xf32>
    %16 = arith.select %14, %15, %12 : vector<4x8x8xi1>, vector<4x8x8xf32>
    %c0_8 = arith.constant 0 : index
    %c0_9 = arith.constant 0 : index
    %c0_10 = arith.constant 0 : index
    %c0_11 = arith.constant 0 : index
    %17 = vector.load %arg4[%c0_8, %c0_9, %c0_10, %c0_11] : memref<1x4x8x8xf32, #tpu.memory_space<vmem>>, vector<1x4x8x8xf32>
    %18 = vector.shape_cast %17 : vector<1x4x8x8xf32> to vector<4x8x8xf32>
    %cst_12 = arith.constant dense<0.000000e+00> : vector<4x8x8xf32>
    %19 = tpu.matmul %10, %16, %cst_12 {dimension_numbers = #tpu.dot_dimension_numbers<[2], [2], [1], [1], [0, 0, 0, 1, 1, 1], [0], [0]>} : vector<4x8x8xf32>, vector<4x8x8xf32>, vector<4x8x8xf32> -> vector<4x8x8xf32>
    %cst_13 = arith.constant 0.353553385 : f32
    %20 = vector.broadcast %cst_13 : f32 to vector<4x8x8xf32>
    %21 = arith.mulf %19, %20 : vector<4x8x8xf32>
    %cst_14 = arith.constant dense<0xFF800000> : vector<4x8xf32>
    %22 = vector.multi_reduction <maximumf>, %21, %cst_14 [2] : vector<4x8x8xf32> to vector<4x8xf32>
    %23 = vector.shape_cast %22 : vector<4x8xf32> to vector<4x8x1xf32>
    %24 = vector.broadcast %23 : vector<4x8x1xf32> to vector<4x8x8xf32>
    %25 = arith.subf %21, %24 : vector<4x8x8xf32>
    %26 = math.exp %25 : vector<4x8x8xf32>
    %cst_15 = arith.constant dense<0.000000e+00> : vector<4x8xf32>
    %27 = vector.multi_reduction <add>, %26, %cst_15 [2] : vector<4x8x8xf32> to vector<4x8xf32>
    %28 = vector.shape_cast %27 : vector<4x8xf32> to vector<4x8x1xf32>
    %29 = vector.broadcast %28 : vector<4x8x1xf32> to vector<4x8x8xf32>
    %30 = arith.divf %26, %29 : vector<4x8x8xf32>
    %cst_16 = arith.constant dense<0.000000e+00> : vector<4x8x8xf32>
    %31 = tpu.matmul %30, %18, %cst_16 {dimension_numbers = #tpu.dot_dimension_numbers<[2], [1], [1], [2], [0, 0, 0, 1, 1, 2], [0], [0]>} : vector<4x8x8xf32>, vector<4x8x8xf32>, vector<4x8x8xf32> -> vector<4x8x8xf32>
    %32 = vector.extract_strided_slice %31 {offsets = [0, 0, 0], sizes = [1, 8, 8], strides = [1, 1, 1]} : vector<4x8x8xf32> to vector<1x8x8xf32>
    %33 = vector.shape_cast %32 : vector<1x8x8xf32> to vector<8x8xf32>
    %34 = vector.extract_strided_slice %31 {offsets = [1, 0, 0], sizes = [1, 8, 8], strides = [1, 1, 1]} : vector<4x8x8xf32> to vector<1x8x8xf32>
    %35 = vector.shape_cast %34 : vector<1x8x8xf32> to vector<8x8xf32>
    %36 = vector.extract_strided_slice %31 {offsets = [2, 0, 0], sizes = [1, 8, 8], strides = [1, 1, 1]} : vector<4x8x8xf32> to vector<1x8x8xf32>
    %37 = vector.shape_cast %36 : vector<1x8x8xf32> to vector<8x8xf32>
    %38 = vector.extract_strided_slice %31 {offsets = [3, 0, 0], sizes = [1, 8, 8], strides = [1, 1, 1]} : vector<4x8x8xf32> to vector<1x8x8xf32>
    %39 = vector.shape_cast %38 : vector<1x8x8xf32> to vector<8x8xf32>
    %40 = tpu.concatenate %33, %35, %37, %39 in 1 : vector<8x8xf32>, vector<8x8xf32>, vector<8x8xf32>, vector<8x8xf32> -> vector<8x32xf32>
    %c0_17 = arith.constant 0 : index
    %c0_18 = arith.constant 0 : index
    %41 = vector.load %arg5[%c0_17, %c0_18] : memref<32x32xf32, #tpu.memory_space<vmem>>, vector<32x32xf32>
    %cst_19 = arith.constant dense<0.000000e+00> : vector<8x32xf32>
    %42 = tpu.matmul %40, %41, %cst_19 {dimension_numbers = #tpu.dot_dimension_numbers<[1], [0], [0], [1], [0, 0, 1, 1], [], []>} : vector<8x32xf32>, vector<32x32xf32>, vector<8x32xf32> -> vector<8x32xf32>
    %c0_20 = arith.constant 0 : index
    %c0_21 = arith.constant 0 : index
    %43 = vector.load %arg6[%c0_20, %c0_21] : memref<1x32xf32, #tpu.memory_space<vmem>>, vector<1x32xf32>
    %44 = vector.broadcast %43 : vector<1x32xf32> to vector<8x32xf32>
    %45 = arith.addf %42, %44 : vector<8x32xf32>
    %c0_22 = arith.constant 0 : index
    %c0_23 = arith.constant 0 : index
    %46 = vector.load %arg7[%c0_22, %c0_23] : memref<8x32xf32, #tpu.memory_space<vmem>>, vector<8x32xf32>
    tpu.vector_store %arg7[%c0_22, %c0_23], %45 {strides = array<i32>} : memref<8x32xf32, #tpu.memory_space<vmem>>, vector<8x32xf32>,
    return
  }
  func.func @transform_0(%arg0: i32, %arg1: memref<2xi32, #tpu.memory_space<smem>>) -> (i32, i32, i32, i32) {
    %c0_i32 = arith.constant 0 : i32
    %c0_i32_0 = arith.constant 0 : i32
    %c0_i32_1 = arith.constant 0 : i32
    %c0_i32_2 = arith.constant 0 : i32
    return %arg0, %c0_i32, %c0_i32_0, %c0_i32_1 : i32, i32, i32, i32
  }
  func.func @transform_1(%arg0: i32, %arg1: memref<2xi32, #tpu.memory_space<smem>>) -> (i32, i32, i32, i32) {
    %c0_i32 = arith.constant 0 : i32
    %c0_i32_0 = arith.constant 0 : i32
    %c0_i32_1 = arith.constant 0 : i32
    %c0_i32_2 = arith.constant 0 : i32
    return %arg0, %c0_i32, %c0_i32_0, %c0_i32_1 : i32, i32, i32, i32
  }
  func.func @transform_2(%arg0: i32, %arg1: memref<2xi32, #tpu.memory_space<smem>>) -> (i32, i32, i32, i32) {
    %c0_i32 = arith.constant 0 : i32
    %c0_i32_0 = arith.constant 0 : i32
    %c0_i32_1 = arith.constant 0 : i32
    %c0_i32_2 = arith.constant 0 : i32
    return %arg0, %c0_i32, %c0_i32_0, %c0_i32_1 : i32, i32, i32, i32
  }
  func.func @transform_3(%arg0: i32, %arg1: memref<2xi32, #tpu.memory_space<smem>>) -> (i32, i32) {
    %c0_i32 = arith.constant 0 : i32
    %c0_i32_0 = arith.constant 0 : i32
    %c0_i32_1 = arith.constant 0 : i32
    return %c0_i32, %c0_i32_0 : i32, i32
  }
  func.func @transform_4(%arg0: i32, %arg1: memref<2xi32, #tpu.memory_space<smem>>) -> (i32, i32) {
    %c0_i32 = arith.constant 0 : i32
    %c0_i32_0 = arith.constant 0 : i32
    %c0_i32_1 = arith.constant 0 : i32
    return %c0_i32, %c0_i32_0 : i32, i32
  }
  func.func @transform_5(%arg0: i32, %arg1: memref<2xi32, #tpu.memory_space<smem>>) -> (i32, i32) {
    %c0_i32 = arith.constant 0 : i32
    %c0_i32_0 = arith.constant 0 : i32
    return %arg0, %c0_i32 : i32, i32
  }
}

</mosaic_0001>

<llo_original>
// kernel: multihead_forward.1
$region0: #{multihead_forward.1}
  #allocation0 [shape = 'u32[]', space=smem, size = 0x4, offset = 0x4, fixed_abs, tag = 'smem constant byte address 0x4 - core index']
  #allocation1 [shape = 'u32[72,128]{1,0:T(1,128)}', space=vmem, size = 0x9000, scoped, tag = 'internal scratch']
  #allocation2 [shape = 's32[1]{0}', space=sflag, size = 0x4, scoped, tag = 'scoped memory for multihead_forward.1']
  #allocation3 [shape = 'u8[512]{0}', space=smem, size = 0x200, scoped, tag = 'prefetched SMEM operand 0']
  %s0 = inlined_call_operand.vmem [shape: s32[2], index: 0, kind: input, shape index: {}]
  %s1 = inlined_call_operand.vmem [shape: f32[2,4,8,8], index: 1, kind: input, shape index: {}]
  %s2 = inlined_call_operand.vmem [shape: f32[2,4,8,8], index: 2, kind: input, shape index: {}]
  %s3 = inlined_call_operand.vmem [shape: f32[2,4,8,8], index: 3, kind: input, shape index: {}]
  %s4 = inlined_call_operand.vmem [shape: f32[32,32], index: 4, kind: input, shape index: {}]
  %s5 = inlined_call_operand.vmem [shape: f32[1,32], index: 5, kind: input, shape index: {}]
  %s6 = inlined_call_operand.hbm [shape: f32[16,32], index: 6, kind: output, shape index: {}]
  %s7 = sld [smem:[#allocation0]]
  $region53: #{multihead_forward.1} parent=0
    _
  %s9 = ssub.s32 1, %s7
  %s10 = scalar_select 0, %s9, %s7
  %s12 = sshll.u32 %s0, 4
  %s13 = int_to_ptr.vmem [resolvable:$true] %s12
  %15 = dma.vmem_to_smem %s13, 16, [#allocation3], [#allocation2]
  %17 = dma.done [#allocation2], 16
  %18 = sfence
  $region1: #{multihead_forward.1} parent=0
    #allocation4 [shape = 'u8[8192]{0}', space=vmem, size = 0x2000, scoped, tag = 'output window, operand 0']
    #allocation5 [shape = 's32[2]{0}', space=sflag, size = 0x8, scoped, tag = 'scoped memory for multihead_forward.1']
    %19 = vsyncpa [#allocation5], 0
    %s20 = scalar_lea.sflag [#allocation5], 1
    %21 = vsyncpa %s20, 0
    loop: start=0, step=1, limit=4
    $region2: #{multihead_forward.1} parent=1 // loop_pre_header
      _
    $region3: #{multihead_forward.1} parent=1 // loop_header
      %s23 = sphi 0, %s27
      %p24 = scmp.ge.s32.totalorder %s23, 4
      %s33 = sphi 0, %s35
      %s36 = sphi 0, %s33
      %s37 = sphi 0, %s36
      %s53 = sphi 0, %s37
      %s59 = sphi 0, %s61
      %s62 = sphi 0, %s59
      %s63 = sphi 0, %s62
      %s79 = sphi 0, %s63
      %s85 = sphi 0, %s87
      %s88 = sphi 0, %s85
      %s89 = sphi 0, %s88
      %s105 = sphi 0, %s89
      %s109 = sphi 0, %s109
      %s111 = sphi 0, %s109
      %s112 = sphi 0, %s111
      %s126 = sphi 0, %s112
      %s130 = sphi 0, %s130
      %s132 = sphi 0, %s130
      %s133 = sphi 0, %s132
      %s147 = sphi 0, %s133
      %s153 = sphi 0, %s155
      %s156 = sphi 0, %s153
      %s157 = sphi 0, %s156
      %s173 = sphi 0, %s157
    $region4: #{multihead_forward.1} parent=1 // loop_header_branch
      %26 = sbr.rel (%p24) target = $region8
    $region5: #{multihead_forward.1} parent=1 // loop_body
      %s28 = ssub.s32 %s23, 1
      %s29 = ssub.s32 %s23, 2
      %s30 = sadd.s32 %s23, 1
      %s31 = ssub.s32 %s23, %s30
      %p32 = scmp.eq.s32.totalorder %s31, 0
      %s34 = sadd.s32 %s33, 1
      %s35 = scalar_select %p32, %s33, %s34
      %p38 = pneg %p32
      %p39 = scmp.eq.s32.totalorder %s23, 1
      %p40 = por %p38, %p39
      %p41 = scmp.ne.s32.totalorder %s33, %s36
      %p42 = scmp.eq.s32.totalorder %s23, 0
      %p43 = por %p41, %p42
      %p44 = scmp.ne.s32.totalorder %s33, %s36
      %p45 = scmp.eq.s32.totalorder %s28, 1
      %p46 = por %p44, %p45
      %p47 = scmp.ne.s32.totalorder %s36, %s37
      %p48 = scmp.eq.s32.totalorder %s28, 0
      %p49 = por %p47, %p48
      %p50 = scmp.ne.s32.totalorder %s36, %s37
      %p51 = scmp.eq.s32.totalorder %s29, 1
      %p52 = por %p50, %p51
      %p54 = scmp.ne.s32.totalorder %s37, %s53
      %p55 = scmp.eq.s32.totalorder %s29, 0
      %p56 = por %p54, %p55
      %s57 = ssub.s32 %s23, %s30
      %p58 = scmp.eq.s32.totalorder %s57, 0
      %s60 = sadd.s32 %s59, 1
      %s61 = scalar_select %p58, %s59, %s60
      %p64 = pneg %p58
      %p65 = scmp.eq.s32.totalorder %s23, 1
      %p66 = por %p64, %p65
      %p67 = scmp.ne.s32.totalorder %s59, %s62
      %p68 = scmp.eq.s32.totalorder %s23, 0
      %p69 = por %p67, %p68
      %p70 = scmp.ne.s32.totalorder %s59, %s62
      %p71 = scmp.eq.s32.totalorder %s28, 1
      %p72 = por %p70, %p71
      %p73 = scmp.ne.s32.totalorder %s62, %s63
      %p74 = scmp.eq.s32.totalorder %s28, 0
      %p75 = por %p73, %p74
      %p76 = scmp.ne.s32.totalorder %s62, %s63
      %p77 = scmp.eq.s32.totalorder %s29, 1
      %p78 = por %p76, %p77
      %p80 = scmp.ne.s32.totalorder %s63, %s79
      %p81 = scmp.eq.s32.totalorder %s29, 0
      %p82 = por %p80, %p81
      %s83 = ssub.s32 %s23, %s30
      %p84 = scmp.eq.s32.totalorder %s83, 0
      %s86 = sadd.s32 %s85, 1
      %s87 = scalar_select %p84, %s85, %s86
      %p90 = pneg %p84
      %p91 = scmp.eq.s32.totalorder %s23, 1
      %p92 = por %p90, %p91
      %p93 = scmp.ne.s32.totalorder %s85, %s88
      %p94 = scmp.eq.s32.totalorder %s23, 0
      %p95 = por %p93, %p94
      %p96 = scmp.ne.s32.totalorder %s85, %s88
      %p97 = scmp.eq.s32.totalorder %s28, 1
      %p98 = por %p96, %p97
      %p99 = scmp.ne.s32.totalorder %s88, %s89
      %p100 = scmp.eq.s32.totalorder %s28, 0
      %p101 = por %p99, %p100
      %p102 = scmp.ne.s32.totalorder %s88, %s89
      %p103 = scmp.eq.s32.totalorder %s29, 1
      %p104 = por %p102, %p103
      %p106 = scmp.ne.s32.totalorder %s89, %s105
      %p107 = scmp.eq.s32.totalorder %s29, 0
      %p108 = por %p106, %p107
      %s110 = sadd.s32 %s109, 1
      %p113 = scmp.eq.s32.totalorder %s23, 1
      %p114 = scmp.ne.s32.totalorder %s109, %s111
      %p115 = scmp.eq.s32.totalorder %s23, 0
      %p116 = por %p114, %p115
      %p117 = scmp.ne.s32.totalorder %s109, %s111
      %p118 = scmp.eq.s32.totalorder %s28, 1
      %p119 = por %p117, %p118
      %p120 = scmp.ne.s32.totalorder %s111, %s112
      %p121 = scmp.eq.s32.totalorder %s28, 0
      %p122 = por %p120, %p121
      %p123 = scmp.ne.s32.totalorder %s111, %s112
      %p124 = scmp.eq.s32.totalorder %s29, 1
      %p125 = por %p123, %p124
      %p127 = scmp.ne.s32.totalorder %s112, %s126
      %p128 = scmp.eq.s32.totalorder %s29, 0
      %p129 = por %p127, %p128
      %s131 = sadd.s32 %s130, 1
      %p134 = scmp.eq.s32.totalorder %s23, 1
      %p135 = scmp.ne.s32.totalorder %s130, %s132
      %p136 = scmp.eq.s32.totalorder %s23, 0
      %p137 = por %p135, %p136
      %p138 = scmp.ne.s32.totalorder %s130, %s132
      %p139 = scmp.eq.s32.totalorder %s28, 1
      %p140 = por %p138, %p139
      %p141 = scmp.ne.s32.totalorder %s132, %s133
      %p142 = scmp.eq.s32.totalorder %s28, 0
      %p143 = por %p141, %p142
      %p144 = scmp.ne.s32.totalorder %s132, %s133
      %p145 = scmp.eq.s32.totalorder %s29, 1
      %p146 = por %p144, %p145
      %p148 = scmp.ne.s32.totalorder %s133, %s147
      %p149 = scmp.eq.s32.totalorder %s29, 0
      %p150 = por %p148, %p149
      %s151 = ssub.s32 %s23, %s30
      %p152 = scmp.eq.s32.totalorder %s151, 0
      %s154 = sadd.s32 %s153, 1
      %s155 = scalar_select %p152, %s153, %s154
      %p158 = pneg %p152
      %p159 = scmp.eq.s32.totalorder %s23, 1
      %p160 = por %p158, %p159
      %p161 = scmp.ne.s32.totalorder %s153, %s156
      %p162 = scmp.eq.s32.totalorder %s23, 0
      %p163 = por %p161, %p162
      %p164 = scmp.ne.s32.totalorder %s153, %s156
      %p165 = scmp.eq.s32.totalorder %s28, 1
      %p166 = por %p164, %p165
      %p167 = scmp.ne.s32.totalorder %s156, %s157
      %p168 = scmp.eq.s32.totalorder %s28, 0
      %p169 = por %p167, %p168
      %p170 = scmp.ne.s32.totalorder %s156, %s157
      %p171 = scmp.eq.s32.totalorder %s29, 1
      %p172 = por %p170, %p171
      %p174 = scmp.ne.s32.totalorder %s157, %s173
      %p175 = scmp.eq.s32.totalorder %s29, 0
      %p176 = por %p174, %p175
      %p177 = scmp.le.s32.totalorder 1, %s23
      %p178 = scmp.lt.s32.totalorder %s23, 3
      %p179 = pnand %p177, %p178
      %p180 = pneg %p179
      // Predicated region
      $region9: #{multihead_forward.1} parent=5 // pred_check
        _
      $region10: #{multihead_forward.1} parent=5 // pred_check_branch
        %182 = sbr.rel (%p179) target = $region12
      $region11: #{multihead_forward.1} parent=5 // pred_region
        %s183 = ssub.s32 %s23, 1
        // Predicated region
        $region13: #{multihead_forward.1} parent=11 // pred_check
          %p184 = pneg %p122
        $region14: #{multihead_forward.1} parent=11 // pred_check_branch
          %186 = sbr.rel (%p184) target = $region16
        $region15: #{multihead_forward.1} parent=11 // pred_region
          _
        $region16: #{multihead_forward.1} parent=11 // pred_fallthru
          _
        // Predicated region
        $region17: #{multihead_forward.1} parent=11 // pred_check
          %p187 = pneg %p143
        $region18: #{multihead_forward.1} parent=11 // pred_check_branch
          %189 = sbr.rel (%p187) target = $region20
        $region19: #{multihead_forward.1} parent=11 // pred_region
          _
        $region20: #{multihead_forward.1} parent=11 // pred_fallthru
          _
      $region12: #{multihead_forward.1} parent=5 // pred_fallthru
        _
      %p190 = scmp.lt.s32.totalorder %s23, 2
      // Predicated region
      $region21: #{multihead_forward.1} parent=5 // pred_check
        %p191 = pneg %p190
      $region22: #{multihead_forward.1} parent=5 // pred_check_branch
        %193 = sbr.rel (%p191) target = $region24
      $region23: #{multihead_forward.1} parent=5 // pred_region
        // Predicated region
        $region25: #{multihead_forward.1} parent=23 // pred_check
          %p194 = pneg %p43
        $region26: #{multihead_forward.1} parent=23 // pred_check_branch
          %196 = sbr.rel (%p194) target = $region28
        $region27: #{multihead_forward.1} parent=23 // pred_region
          %p197 = scmp.lt.s32.totalorder %s23, 1
          %s198 = scalar_select %p197, %s23, 1
          %s199 = smul.addr %s198, 4
          %s200 = smul.addr %s199, 8
          %s201 = scalar_lea.vmem %s1, %s200
        $region28: #{multihead_forward.1} parent=23 // pred_fallthru
          _
        // Predicated region
        $region29: #{multihead_forward.1} parent=23 // pred_check
          %p202 = pneg %p69
        $region30: #{multihead_forward.1} parent=23 // pred_check_branch
          %204 = sbr.rel (%p202) target = $region32
        $region31: #{multihead_forward.1} parent=23 // pred_region
          %p205 = scmp.lt.s32.totalorder %s23, 1
          %s206 = scalar_select %p205, %s23, 1
          %s207 = smul.addr %s206, 4
          %s208 = smul.addr %s207, 8
          %s209 = scalar_lea.vmem %s2, %s208
        $region32: #{multihead_forward.1} parent=23 // pred_fallthru
          _
        // Predicated region
        $region33: #{multihead_forward.1} parent=23 // pred_check
          %p210 = pneg %p95
        $region34: #{multihead_forward.1} parent=23 // pred_check_branch
          %212 = sbr.rel (%p210) target = $region36
        $region35: #{multihead_forward.1} parent=23 // pred_region
          %p213 = scmp.lt.s32.totalorder %s23, 1
          %s214 = scalar_select %p213, %s23, 1
          %s215 = smul.addr %s214, 4
          %s216 = smul.addr %s215, 8
          %s217 = scalar_lea.vmem %s3, %s216
        $region36: #{multihead_forward.1} parent=23 // pred_fallthru
          _
      $region24: #{multihead_forward.1} parent=5 // pred_fallthru
        _
      %p218 = scmp.le.s32.totalorder 1, %s23
      %p219 = scmp.lt.s32.totalorder %s23, 3
      %p220 = pnand %p218, %p219
      %p221 = pneg %p220
      // Predicated region
      $region37: #{multihead_forward.1} parent=5 // pred_check
        _
      $region38: #{multihead_forward.1} parent=5 // pred_check_branch
        %223 = sbr.rel (%p220) target = $region40
      $region39: #{multihead_forward.1} parent=5 // pred_region
        %s224 = ssub.s32 %s23, 1
        %p225 = scmp.lt.s32.totalorder %s28, 1
        %s226 = scalar_select %p225, %s28, 1
        %s227 = smul.addr %s226, 4
        %s228 = smul.addr %s227, 8
        %s229 = scalar_lea.vmem %s1, %s228
        %p230 = pneg %p49
        %p231 = pneg %p46
        %p232 = scmp.lt.s32.totalorder %s28, 1
        %s233 = scalar_select %p232, %s28, 1
        %s234 = smul.addr %s233, 4
        %s235 = smul.addr %s234, 8
        %s236 = scalar_lea.vmem %s2, %s235
        %p237 = pneg %p75
        %p238 = pneg %p72
        %p239 = scmp.lt.s32.totalorder %s28, 1
        %s240 = scalar_select %p239, %s28, 1
        %s241 = smul.addr %s240, 4
        %s242 = smul.addr %s241, 8
        %s243 = scalar_lea.vmem %s3, %s242
        %p244 = pneg %p101
        %p245 = pneg %p98
        %p246 = pneg %p122
        %p247 = pneg %p119
        %p248 = pneg %p143
        %p249 = pneg %p140
        %p250 = pneg %p169
        %p251 = pneg %p166
        %s252 = sand.u32 %s156, 1
        %s253 = scalar_lea.sflag [#allocation5], %s252
        %s254 = sand.u32 %s156, 1
        %s255 = smul.addr %s254, 8
        %s256 = scalar_lea.vmem [#allocation4], %s255
        %p257 = scmp.lt.s32.totalorder %s28, 1
        %s258 = scalar_select %p257, %s28, 1
        %s259 = smul.addr %s258, 4
        %s260 = smul.addr %s259, 8
        %s261 = scalar_lea.vmem %s1, %s260
        %p262 = scmp.lt.s32.totalorder %s28, 1
        %s263 = scalar_select %p262, %s28, 1
        %s264 = smul.addr %s263, 4
        %s265 = smul.addr %s264, 8
        %s266 = scalar_lea.vmem %s2, %s265
        %p267 = scmp.lt.s32.totalorder %s28, 1
        %s268 = scalar_select %p267, %s28, 1
        %s269 = smul.addr %s268, 4
        %s270 = smul.addr %s269, 8
        %s271 = scalar_lea.vmem %s3, %s270
        %v272 = vlaneseq
        %v273 = vshrl.u32 %v272, 7
        %s274 = sld [smem:[#allocation3 + %s28]]
        %v275 = vstv %s274
        %vm276 = vcmp.ge.s32.totalorder %v273, %v275
        %v277 = vld [vmem:[%s261] sm:$0xff]
        %v278 = vld [vmem:[%s261 + $0x8] sm:$0xff]
        %v279 = vld [vmem:[%s261 + $0x10] sm:$0xff]
        %v280 = vld [vmem:[%s261 + $0x18] sm:$0xff]
        %v281 = vsel %vm276, 1, 0
        %vm282 = vcmp.eq.s32.totalorder %v281, 1
        %v283 = vsel %vm282, 0.0, %v277
        %v284 = vsel %vm282, 0.0, %v278
        %v285 = vsel %vm282, 0.0, %v279
        %v286 = vsel %vm282, 0.0, %v280
        %v287 = vld [vmem:[%s266] sm:$0xff]
        %v288 = vld [vmem:[%s266 + $0x8] sm:$0xff]
        %v289 = vld [vmem:[%s266 + $0x10] sm:$0xff]
        %v290 = vld [vmem:[%s266 + $0x18] sm:$0xff]
        %v291 = vsel %vm282, 0.0, %v287
        %v292 = vsel %vm282, 0.0, %v288
        %v293 = vsel %vm282, 0.0, %v289
        %v294 = vsel %vm282, 0.0, %v290
        %v295 = vld [vmem:[%s271] sm:$0xff]
        %v296 = vld [vmem:[%s271 + $0x8] sm:$0xff]
        %v297 = vld [vmem:[%s271 + $0x10] sm:$0xff]
        %v298 = vld [vmem:[%s271 + $0x18] sm:$0xff]
        %vm299 = vcmask 64512
        %v301 = vsel %vm299, %v283, 0
        %v304 = vsel %vm299, %v291, 0
        %306 = vmatpush.xpose.msra.mxu0 0.0
        %307 = vmatpush.xpose.msra.mxu0 0.0
        %308 = vmatpush.xpose.msra.mxu0 0.0
        %309 = vmatpush.xpose.msra.mxu0 0.0
        %310 = vmatpush.xpose.msra.mxu0 0.0
        %311 = vmatpush.xpose.msra.mxu0 0.0
        %312 = vmatpush.xpose.msra.mxu0 0.0
        %313 = vmatpush.xpose.msra.mxu0 0.0
        %314 = vmatpush.xpose.msra.mxu0 0.0
        %315 = vmatpush.xpose.msra.mxu0 0.0
        %316 = vmatpush.xpose.msra.mxu0 0.0
        %317 = vmatpush.xpose.msra.mxu0 0.0
        %318 = vmatpush.xpose.msra.mxu0 0.0
        %319 = vmatpush.xpose.msra.mxu0 0.0
        %320 = vmatpush.xpose.msra.mxu0 0.0
        %321 = vmatpush.xpose.msra.mxu0 %v304
        %322 = vmatmul.f32.gmra.mxu0 %v301
        %v323 = vpop.f32.mrf.mxu0
        %v324 = vadd.f32 0.0, %v323
        %325 = vdwg.mxu0
        %v327 = vsel %vm299, %v284, 0
        %v330 = vsel %vm299, %v292, 0
        %332 = vmatpush.xpose.msra.mxu0 0.0
        %333 = vmatpush.xpose.msra.mxu0 0.0
        %334 = vmatpush.xpose.msra.mxu0 0.0
        %335 = vmatpush.xpose.msra.mxu0 0.0
        %336 = vmatpush.xpose.msra.mxu0 0.0
        %337 = vmatpush.xpose.msra.mxu0 0.0
        %338 = vmatpush.xpose.msra.mxu0 0.0
        %339 = vmatpush.xpose.msra.mxu0 0.0
        %340 = vmatpush.xpose.msra.mxu0 0.0
        %341 = vmatpush.xpose.msra.mxu0 0.0
        %342 = vmatpush.xpose.msra.mxu0 0.0
        %343 = vmatpush.xpose.msra.mxu0 0.0
        %344 = vmatpush.xpose.msra.mxu0 0.0
        %345 = vmatpush.xpose.msra.mxu0 0.0
        %346 = vmatpush.xpose.msra.mxu0 0.0
        %347 = vmatpush.xpose.msra.mxu0 %v330
        %348 = vmatmul.f32.gmra.mxu0 %v327
        %v349 = vpop.f32.mrf.mxu0
        %v350 = vadd.f32 0.0, %v349
        %351 = vdwg.mxu0
        %v353 = vsel %vm299, %v285, 0
        %v356 = vsel %vm299, %v293, 0
        %358 = vmatpush.xpose.msra.mxu0 0.0
        %359 = vmatpush.xpose.msra.mxu0 0.0
        %360 = vmatpush.xpose.msra.mxu0 0.0
        %361 = vmatpush.xpose.msra.mxu0 0.0
        %362 = vmatpush.xpose.msra.mxu0 0.0
        %363 = vmatpush.xpose.msra.mxu0 0.0
        %364 = vmatpush.xpose.msra.mxu0 0.0
        %365 = vmatpush.xpose.msra.mxu0 0.0
        %366 = vmatpush.xpose.msra.mxu0 0.0
        %367 = vmatpush.xpose.msra.mxu0 0.0
        %368 = vmatpush.xpose.msra.mxu0 0.0
        %369 = vmatpush.xpose.msra.mxu0 0.0
        %370 = vmatpush.xpose.msra.mxu0 0.0
        %371 = vmatpush.xpose.msra.mxu0 0.0
        %372 = vmatpush.xpose.msra.mxu0 0.0
        %373 = vmatpush.xpose.msra.mxu0 %v356
        %374 = vmatmul.f32.gmra.mxu0 %v353
        %v375 = vpop.f32.mrf.mxu0
        %v376 = vadd.f32 0.0, %v375
        %377 = vdwg.mxu0
        %v379 = vsel %vm299, %v286, 0
        %v382 = vsel %vm299, %v294, 0
        %384 = vmatpush.xpose.msra.mxu0 0.0
        %385 = vmatpush.xpose.msra.mxu0 0.0
        %386 = vmatpush.xpose.msra.mxu0 0.0
        %387 = vmatpush.xpose.msra.mxu0 0.0
        %388 = vmatpush.xpose.msra.mxu0 0.0
        %389 = vmatpush.xpose.msra.mxu0 0.0
        %390 = vmatpush.xpose.msra.mxu0 0.0
        %391 = vmatpush.xpose.msra.mxu0 0.0
        %392 = vmatpush.xpose.msra.mxu0 0.0
        %393 = vmatpush.xpose.msra.mxu0 0.0
        %394 = vmatpush.xpose.msra.mxu0 0.0
        %395 = vmatpush.xpose.msra.mxu0 0.0
        %396 = vmatpush.xpose.msra.mxu0 0.0
        %397 = vmatpush.xpose.msra.mxu0 0.0
        %398 = vmatpush.xpose.msra.mxu0 0.0
        %399 = vmatpush.xpose.msra.mxu0 %v382
        %400 = vmatmul.f32.gmra.mxu0 %v379
        %v401 = vpop.f32.mrf.mxu0
        %v402 = vadd.f32 0.0, %v401
        %403 = vdwg.mxu0
        %v404 = vmul.f32 %v324, 0.35355338
        %v405 = vmul.f32 %v350, 0.35355338
        %v406 = vmul.f32 %v376, 0.35355338
        %v407 = vmul.f32 %v402, 0.35355338
        %v408 = vsel %vm299, %v404, -inf
        %409 = vmax.xlane.f32.xlu0 %v408
        %v410 = vpop.xlane.xlu0 %409
        %v411 = vsel %vm299, %v405, -inf
        %412 = vmax.xlane.f32.xlu0 %v411
        %v413 = vpop.xlane.xlu0 %412
        %v414 = vsel %vm299, %v406, -inf
        %415 = vmax.xlane.f32.xlu0 %v414
        %v416 = vpop.xlane.xlu0 %415
        %v417 = vsel %vm299, %v407, -inf
        %418 = vmax.xlane.f32.xlu0 %v417
        %v419 = vpop.xlane.xlu0 %418
        %v420 = vsub.f32 %v404, %v410
        %v421 = vsub.f32 %v405, %v413
        %v422 = vsub.f32 %v406, %v416
        %v423 = vsub.f32 %v407, %v419
        %v424 = vmul.f32 %v420, 1.442695
        %v425 = vpow.pop %v424
        %v426 = vmul.f32 %v421, 1.442695
        %v427 = vpow.pop %v426
        %v428 = vmul.f32 %v422, 1.442695
        %v429 = vpow.pop %v428
        %v430 = vmul.f32 %v423, 1.442695
        %v431 = vpow.pop %v430
        %v432 = vsel %vm299, %v425, 0.0
        %433 = vadd.xlane.f32.xlu0 %v432
        %v434 = vpop.xlane.xlu0 %433
        %v435 = vsel %vm299, %v427, 0.0
        %436 = vadd.xlane.f32.xlu0 %v435
        %v437 = vpop.xlane.xlu0 %436
        %v438 = vsel %vm299, %v429, 0.0
        %439 = vadd.xlane.f32.xlu0 %v438
        %v440 = vpop.xlane.xlu0 %439
        %v441 = vsel %vm299, %v431, 0.0
        %442 = vadd.xlane.f32.xlu0 %v441
        %v443 = vpop.xlane.xlu0 %442
        %v444 = vrcp.pop %v434
        %v445 = vmul.f32 %v434, %v444
        %v446 = vsub.f32 1.0, %v445
        %v447 = vmul.f32 %v444, %v446
        %v448 = vadd.f32 %v444, %v447
        %vm449 = vweird.f32 %v434
        %vm450 = vweird.f32 %v444
        %vm451 = vmor %vm449, %vm450
        %v452 = vsel %vm451, %v444, %v448
        %v453 = vand.u32 2147483647, %v434
        %vm454 = vcmp.eq.f32.partialorder %v453, 8.507059e+37
        %v455 = vand.u32 %v434, 2147483648
        %v456 = vor.u32 1.1754944e-38, %v455
        %v457 = vsel %vm454, %v456, %v452
        %v458 = vmul.f32 %v425, %v457
        %v459 = vrcp.pop %v437
        %v460 = vmul.f32 %v437, %v459
        %v461 = vsub.f32 1.0, %v460
        %v462 = vmul.f32 %v459, %v461
        %v463 = vadd.f32 %v459, %v462
        %vm464 = vweird.f32 %v437
        %vm465 = vweird.f32 %v459
        %vm466 = vmor %vm464, %vm465
        %v467 = vsel %vm466, %v459, %v463
        %v468 = vand.u32 2147483647, %v437
        %vm469 = vcmp.eq.f32.partialorder %v468, 8.507059e+37
        %v470 = vand.u32 %v437, 2147483648
        %v471 = vor.u32 1.1754944e-38, %v470
        %v472 = vsel %vm469, %v471, %v467
        %v473 = vmul.f32 %v427, %v472
        %v474 = vrcp.pop %v440
        %v475 = vmul.f32 %v440, %v474
        %v476 = vsub.f32 1.0, %v475
        %v477 = vmul.f32 %v474, %v476
        %v478 = vadd.f32 %v474, %v477
        %vm479 = vweird.f32 %v440
        %vm480 = vweird.f32 %v474
        %vm481 = vmor %vm479, %vm480
        %v482 = vsel %vm481, %v474, %v478
        %v483 = vand.u32 2147483647, %v440
        %vm484 = vcmp.eq.f32.partialorder %v483, 8.507059e+37
        %v485 = vand.u32 %v440, 2147483648
        %v486 = vor.u32 1.1754944e-38, %v485
        %v487 = vsel %vm484, %v486, %v482
        %v488 = vmul.f32 %v429, %v487
        %v489 = vrcp.pop %v443
        %v490 = vmul.f32 %v443, %v489
        %v491 = vsub.f32 1.0, %v490
        %v492 = vmul.f32 %v489, %v491
        %v493 = vadd.f32 %v489, %v492
        %vm494 = vweird.f32 %v443
        %vm495 = vweird.f32 %v489
        %vm496 = vmor %vm494, %vm495
        %v497 = vsel %vm496, %v489, %v493
        %v498 = vand.u32 2147483647, %v443
        %vm499 = vcmp.eq.f32.partialorder %v498, 8.507059e+37
        %v500 = vand.u32 %v443, 2147483648
        %v501 = vor.u32 1.1754944e-38, %v500
        %v502 = vsel %vm499, %v501, %v497
        %v503 = vmul.f32 %v431, %v502
        %v505 = vsel %vm299, %v458, 0
        %507 = vmatpush.msra.mxu0 0.0
        %508 = vmatpush.msra.mxu0 0.0
        %509 = vmatpush.msra.mxu0 0.0
        %510 = vmatpush.msra.mxu0 0.0
        %511 = vmatpush.msra.mxu0 0.0
        %512 = vmatpush.msra.mxu0 0.0
        %513 = vmatpush.msra.mxu0 0.0
        %514 = vmatpush.msra.mxu0 0.0
        %515 = vmatpush.msra.mxu0 0.0
        %516 = vmatpush.msra.mxu0 0.0
        %517 = vmatpush.msra.mxu0 0.0
        %518 = vmatpush.msra.mxu0 0.0
        %519 = vmatpush.msra.mxu0 0.0
        %520 = vmatpush.msra.mxu0 0.0
        %521 = vmatpush.msra.mxu0 0.0
        %522 = vmatpush.msra.mxu0 %v295
        %523 = vmatmul.f32.gmra.mxu0 %v505
        %v524 = vpop.f32.mrf.mxu0
        %v525 = vadd.f32 0.0, %v524
        %526 = vdwg.mxu0
        %v528 = vsel %vm299, %v473, 0
        %530 = vmatpush.msra.mxu0 0.0
        %531 = vmatpush.msra.mxu0 0.0
        %532 = vmatpush.msra.mxu0 0.0
        %533 = vmatpush.msra.mxu0 0.0
        %534 = vmatpush.msra.mxu0 0.0
        %535 = vmatpush.msra.mxu0 0.0
        %536 = vmatpush.msra.mxu0 0.0
        %537 = vmatpush.msra.mxu0 0.0
        %538 = vmatpush.msra.mxu0 0.0
        %539 = vmatpush.msra.mxu0 0.0
        %540 = vmatpush.msra.mxu0 0.0
        %541 = vmatpush.msra.mxu0 0.0
        %542 = vmatpush.msra.mxu0 0.0
        %543 = vmatpush.msra.mxu0 0.0
        %544 = vmatpush.msra.mxu0 0.0
        %545 = vmatpush.msra.mxu0 %v296
        %546 = vmatmul.f32.gmra.mxu0 %v528
        %v547 = vpop.f32.mrf.mxu0
        %v548 = vadd.f32 0.0, %v547
        %549 = vdwg.mxu0
        %v551 = vsel %vm299, %v488, 0
        %553 = vmatpush.msra.mxu0 0.0
        %554 = vmatpush.msra.mxu0 0.0
        %555 = vmatpush.msra.mxu0 0.0
        %556 = vmatpush.msra.mxu0 0.0
        %557 = vmatpush.msra.mxu0 0.0
        %558 = vmatpush.msra.mxu0 0.0
        %559 = vmatpush.msra.mxu0 0.0
        %560 = vmatpush.msra.mxu0 0.0
        %561 = vmatpush.msra.mxu0 0.0
        %562 = vmatpush.msra.mxu0 0.0
        %563 = vmatpush.msra.mxu0 0.0
        %564 = vmatpush.msra.mxu0 0.0
        %565 = vmatpush.msra.mxu0 0.0
        %566 = vmatpush.msra.mxu0 0.0
        %567 = vmatpush.msra.mxu0 0.0
        %568 = vmatpush.msra.mxu0 %v297
        %569 = vmatmul.f32.gmra.mxu0 %v551
        %v570 = vpop.f32.mrf.mxu0
        %v571 = vadd.f32 0.0, %v570
        %572 = vdwg.mxu0
        %v574 = vsel %vm299, %v503, 0
        %576 = vmatpush.msra.mxu0 0.0
        %577 = vmatpush.msra.mxu0 0.0
        %578 = vmatpush.msra.mxu0 0.0
        %579 = vmatpush.msra.mxu0 0.0
        %580 = vmatpush.msra.mxu0 0.0
        %581 = vmatpush.msra.mxu0 0.0
        %582 = vmatpush.msra.mxu0 0.0
        %583 = vmatpush.msra.mxu0 0.0
        %584 = vmatpush.msra.mxu0 0.0
        %585 = vmatpush.msra.mxu0 0.0
        %586 = vmatpush.msra.mxu0 0.0
        %587 = vmatpush.msra.mxu0 0.0
        %588 = vmatpush.msra.mxu0 0.0
        %589 = vmatpush.msra.mxu0 0.0
        %590 = vmatpush.msra.mxu0 0.0
        %591 = vmatpush.msra.mxu0 %v298
        %592 = vmatmul.f32.gmra.mxu0 %v574
        %v593 = vpop.f32.mrf.mxu0
        %v594 = vadd.f32 0.0, %v593
        %595 = vdwg.mxu0
        %597 = vrot.lane.b32.xlu0 %v548, 8
        %v598 = vpop.permute.xlu0 %597
        %601 = vrot.lane.b32.xlu0 %v571, 16
        %v602 = vpop.permute.xlu0 %601
        %605 = vrot.lane.b32.xlu0 %v594, 24
        %v606 = vpop.permute.xlu0 %605
        %v608 = vsel %vm299, %v525, %v598
        %vm609 = vcmask 130048
        %v610 = vsel %vm609, %v608, %v602
        %vm611 = vcmask 195584
        %v612 = vsel %vm611, %v610, %v606
        %v613 = vld [vmem:[%s4] sm:$0xff]
        %v614 = vld [vmem:[%s4 + $0x8] sm:$0xff]
        %v615 = vld [vmem:[%s4 + $0x10] sm:$0xff]
        %v616 = vld [vmem:[%s4 + $0x18] sm:$0xff]
        %v617 = vld [vmem:[%s5] sm:$0x1]
        %v619 = vperm.slane %v617, 0
        %vm621 = vcmask 261120
        %v623 = vsel %vm621, %v612, 0
        %625 = vmatpush.msra.mxu0 0.0
        %626 = vmatpush.msra.mxu0 0.0
        %627 = vmatpush.msra.mxu0 0.0
        %628 = vmatpush.msra.mxu0 0.0
        %629 = vmatpush.msra.mxu0 0.0
        %630 = vmatpush.msra.mxu0 0.0
        %631 = vmatpush.msra.mxu0 0.0
        %632 = vmatpush.msra.mxu0 0.0
        %633 = vmatpush.msra.mxu0 0.0
        %634 = vmatpush.msra.mxu0 0.0
        %635 = vmatpush.msra.mxu0 0.0
        %636 = vmatpush.msra.mxu0 0.0
        %637 = vmatpush.msra.mxu0 %v616
        %638 = vmatpush.msra.mxu0 %v615
        %639 = vmatpush.msra.mxu0 %v614
        %640 = vmatpush.msra.mxu0 %v613
        %641 = vmatmul.f32.gmra.mxu0 %v623
        %v642 = vpop.f32.mrf.mxu0
        %v643 = vadd.f32 %v619, %v642
        %644 = vdwg.mxu0
        %645 = vst.msk [vmem:[%s256] sm:$0xff] %vm621, %v643
        %s646 = sand.u32 %s156, 1
        %s647 = scalar_lea.sflag [#allocation5], %s646
        %s648 = sand.u32 %s156, 1
        %s649 = smul.addr %s648, 8
        %s650 = scalar_lea.vmem [#allocation4], %s649
        // Predicated region
        $region41: #{multihead_forward.1} parent=39 // pred_check
          %p651 = pneg %p166
        $region42: #{multihead_forward.1} parent=39 // pred_check_branch
          %653 = sbr.rel (%p651) target = $region44
        $region43: #{multihead_forward.1} parent=39 // pred_region
          %655 = vsyncadd %s647, 0
          %s656 = smul.addr %s28, 8
          %s657 = scalar_lea.hbm %s6, %s656
          %s659 = sshll.u32 %s650, 4
          %s660 = int_to_ptr.vmem [resolvable:$true] %s659
          %s661 = sshll.u32 %s657, 4
          %s662 = int_to_ptr.hbm [resolvable:$true] %s661
          %664 = dma.vmem_to_hbm [thread:$0]  %s660, 128, %s662, %s647
        $region44: #{multihead_forward.1} parent=39 // pred_fallthru
          _
      $region40: #{multihead_forward.1} parent=5 // pred_fallthru
        _
      %p665 = scmp.le.s32.totalorder 2, %s23
      // Predicated region
      $region45: #{multihead_forward.1} parent=5 // pred_check
        %p666 = pneg %p665
      $region46: #{multihead_forward.1} parent=5 // pred_check_branch
        %668 = sbr.rel (%p666) target = $region48
      $region47: #{multihead_forward.1} parent=5 // pred_region
        %s669 = ssub.s32 %s23, 2
        // Predicated region
        $region49: #{multihead_forward.1} parent=47 // pred_check
          %p670 = pneg %p172
        $region50: #{multihead_forward.1} parent=47 // pred_check_branch
          %672 = sbr.rel (%p670) target = $region52
        $region51: #{multihead_forward.1} parent=47 // pred_region
          %s673 = sand.u32 %s157, 1
          %s674 = scalar_lea.sflag [#allocation5], %s673
          %s675 = sand.u32 %s157, 1
          %s676 = smul.addr %s675, 8
          %s677 = scalar_lea.vmem [#allocation4], %s676
          %679 = dma.done %s674, 128
        $region52: #{multihead_forward.1} parent=47 // pred_fallthru
          _
      $region48: #{multihead_forward.1} parent=5 // pred_fallthru
        _
    $region6: #{multihead_forward.1} parent=1 // loop_footer
      %s27 = sadd.s32 1, %s23
    $region7: #{multihead_forward.1} parent=1 // loop_footer_branch
      %22 = sbr.rel target = $region3
    $region8: #{multihead_forward.1} parent=1 // loop_exit
      _
    %680 = vsyncpa [#allocation5], 1
    %s681 = scalar_lea.sflag [#allocation5], 1
    %682 = vsyncpa %s681, 1

</llo_original>
